<compile_context>
chip_gen: v5e
topology: v5e:2x2
jax: 0.10.0
libtpu: 0.0.40
codegen_flags: <defaults>
</compile_context>

<pallas_src>
import functools

import jax
import jax.numpy as jnp
import numpy as np
from jax.experimental import pallas as pl
from jax.experimental.pallas import tpu as pltpu

_LOG_2PI = float(np.log(2.0 * np.pi))
_OBS_CLIP = 10.0
_OBS_EPS = 1e-8
_MAX_TILE_B = 2048

# Rows of the packed parameter array.
_ROW_OBS_MEAN, _ROW_OBS_VAR, _ROW_B1, _ROW_B2, _ROW_B3, _ROW_LOG_STD = range(6)


def _round_up(x, m):
    return ((x + m - 1) // m) * m


def _bf16_elementwise_ok():
    # bf16 VPU/EUP exists on v6e / v7x only; fall back to f32 elsewhere.
    try:
        kind = jax.devices()[0].device_kind.lower()
    except Exception:
        return False
    return ("v6" in kind) or ("v7" in kind)


_USE_BF16_ACT = _bf16_elementwise_ok()


def _choose_tile_b(B):
    """Batch tile: single tile for small B; fat, even-count tiles for big B."""
    B8 = _round_up(max(B, 1), 8)
    if B8 <= 512:
        return B8                      # one grid step; overhead dominates anyway
    # >= 2 tiles, each <= _MAX_TILE_B, EVEN tile count so both v7x TCs get work.
    n_tiles = 2 * pl.cdiv(B8, 2 * _MAX_TILE_B)
    return _round_up(pl.cdiv(B8, n_tiles), 8)


def _policy_kernel(obs_ref, act_ref, vec_ref, w1_ref, w2_ref, w3_ref,
                   out_ref, *, use_bf16_act):
    obs_dim = obs_ref.shape[-1]
    hid = w1_ref.shape[-1]
    act_dim = act_ref.shape[-1]
    tile_b = obs_ref.shape[0]
    out_rows = out_ref.shape[1]

    # --- unpack the packed [8, dv] parameter rows (static slices, no DMA) ---
    mu      = vec_ref[_ROW_OBS_MEAN:_ROW_OBS_MEAN + 1, :obs_dim]
    var     = vec_ref[_ROW_OBS_VAR:_ROW_OBS_VAR + 1, :obs_dim]
    b1      = vec_ref[_ROW_B1:_ROW_B1 + 1, :hid]
    b2      = vec_ref[_ROW_B2:_ROW_B2 + 1, :hid]
    b3      = vec_ref[_ROW_B3:_ROW_B3 + 1, :act_dim]
    log_std = vec_ref[_ROW_LOG_STD:_ROW_LOG_STD + 1, :act_dim]

    # --- ObsNormalizer: (obs - running_mean) * rsqrt(running_var + eps), clip
    x = obs_ref[...]
    xn = (x - mu) * jax.lax.rsqrt(var + _OBS_EPS)
    xn = jnp.clip(xn, -_OBS_CLIP, _OBS_CLIP)

    # --- MLP: Linear -> Tanh -> Linear -> Tanh -> Linear
    # bf16 MXU inputs, f32 accumulation. tanh in bf16 on v6e/v7x, f32 on v5e.
    # TODO(synk): first layer kept in bf16; use f32 here if exact torch-f32
    # parity of the mean is required (obs_dim is tiny, cost is small on v6e+).
    bf16 = jnp.bfloat16
    pre1 = jnp.dot(xn.astype(bf16), w1_ref[...],
                   preferred_element_type=jnp.float32) + b1
    h1 = jnp.tanh(pre1.astype(bf16)) if use_bf16_act else jnp.tanh(pre1).astype(bf16)
    pre2 = jnp.dot(h1, w2_ref[...], preferred_element_type=jnp.float32) + b2
    h2 = jnp.tanh(pre2.astype(bf16)) if use_bf16_act else jnp.tanh(pre2).astype(bf16)
    mean = jnp.dot(h2, w3_ref[...], preferred_element_type=jnp.float32) + b3   # [T, A]

    # --- MultivariateNormal(mean, diag(exp(log_std))^2).log_prob(action)
    inv_std = jnp.exp(-log_std)                      # [1, A]
    z = (act_ref[...] - mean) * inv_std              # [T, A], f32
    # Lane-dense reduction: ones[1,A] . (z*z)^T -> [1, T] (batch on lanes).
    ssq = jax.lax.dot_general(
        jnp.ones((1, act_dim), jnp.float32), z * z,
        dimension_numbers=(((1,), (1,)), ((), ())),
        preferred_element_type=jnp.float32)          # [1, T]
    sum_log_std = jnp.sum(log_std, axis=-1, keepdims=True)   # [1, 1]
    logp = -0.5 * ssq - sum_log_std - 0.5 * act_dim * _LOG_2PI   # [1, T]

    # --- single lane-dense, sublane-aligned output slab [out_rows, T] ---
    mean_t = jnp.transpose(mean)                     # [A, T] (cheap XLU transpose)
    out_ref[0, :act_dim, :] = mean_t.astype(out_ref.dtype)
    pad_rows = out_rows - act_dim - 1
    if pad_rows > 0:
        tail = jnp.concatenate(
            [logp, jnp.zeros((pad_rows, tile_b), jnp.float32)], axis=0)
    else:
        tail = logp
    out_ref[0, act_dim:, :] = tail.astype(out_ref.dtype)


def prepare_params(params):
    """One-time parameter packing / casting, hoisted out of the hot path."""
    obs_dim, hid = params["w1"].shape
    act_dim = params["w3"].shape[1]
    dv = max(obs_dim, hid, act_dim)

    def _row(v, fill=0.0):
        v = jnp.asarray(v, jnp.float32).reshape(1, -1)
        return jnp.pad(v, ((0, 0), (0, dv - v.shape[-1])), constant_values=fill)

    vecs = jnp.concatenate([
        _row(params["obs_mean"]),
        _row(params["obs_var"], fill=1.0),
        _row(params["b1"]),
        _row(params["b2"]),
        _row(params["b3"]),
        _row(params["log_std"]),
        jnp.zeros((2, dv), jnp.float32),
    ], axis=0)                                        # (8, dv)

    return {
        "vecs": vecs,
        "w1": jnp.asarray(params["w1"], jnp.bfloat16),
        "w2": jnp.asarray(params["w2"], jnp.bfloat16),
        "w3": jnp.asarray(params["w3"], jnp.bfloat16),
    }


@jax.jit
def policy_get_action(obs, action, prepared):
    B, obs_dim = obs.shape
    act_dim = action.shape[-1]
    vecs = prepared["vecs"]
    w1, w2, w3 = prepared["w1"], prepared["w2"], prepared["w3"]
    hid = w1.shape[-1]
    dv = vecs.shape[-1]

    TILE_B = _choose_tile_b(B)
    n_tiles = pl.cdiv(B, TILE_B)                 # ragged last block handled by Pallas
    OUT_ROWS = _round_up(act_dim + 1, 8)         # mean rows + logp row, 8-aligned

    obs = obs.astype(jnp.float32)
    action = action.astype(jnp.float32)

    Bp = n_tiles * TILE_B
    flops = 2 * Bp * (obs_dim * hid + hid * hid + hid * act_dim) + 4 * Bp * act_dim
    transcendentals = 2 * Bp * hid
    bytes_accessed = (4 * (Bp * obs_dim + Bp * act_dim + 8 * dv
                           + n_tiles * OUT_ROWS * TILE_B)
                      + 2 * (w1.size + w2.size + w3.size))

    grid_spec = pltpu.PrefetchScalarGridSpec(
        num_scalar_prefetch=0,
        grid=(n_tiles,),
        in_specs=[
            pl.BlockSpec((TILE_B, obs_dim), lambda i: (i, 0)),   # obs tile
            pl.BlockSpec((TILE_B, act_dim), lambda i: (i, 0)),   # action tile
            # Grid-invariant inputs (constant index_map -> fetched once).
            pl.BlockSpec((8, dv),          lambda i: (0, 0)),    # packed vecs
            pl.BlockSpec((obs_dim, hid),   lambda i: (0, 0)),    # w1 (resident)
            pl.BlockSpec((hid, hid),       lambda i: (0, 0)),    # w2 (resident)
            pl.BlockSpec((hid, act_dim),   lambda i: (0, 0)),    # w3 (resident)
        ],
        out_specs=pl.BlockSpec((1, OUT_ROWS, TILE_B), lambda i: (i, 0, 0)),
    )

    slab = pl.pallas_call(
        functools.partial(_policy_kernel, use_bf16_act=_USE_BF16_ACT),
        out_shape=jax.ShapeDtypeStruct((n_tiles, OUT_ROWS, TILE_B), jnp.float32),
        grid_spec=grid_spec,
        compiler_params=pltpu.CompilerParams(
            dimension_semantics=("parallel",)),
        cost_estimate=pl.CostEstimate(flops=flops,
                                      transcendentals=transcendentals,
                                      bytes_accessed=bytes_accessed),
    )(obs, action, vecs, w1, w2, w3)

    # Unpack the slab: (n_tiles, OUT_ROWS, TILE_B) -> (Bp, OUT_ROWS) -> slices.
    flat = slab.transpose(0, 2, 1).reshape(n_tiles * TILE_B, OUT_ROWS)
    mean = flat[:B, :act_dim]
    logp = flat[:B, act_dim:act_dim + 1]
    return mean, logp


def _reference(obs, action, p, use_bf16_act):
    # Mirrors the kernel's numerics (bf16 matmul inputs / activations,
    # f32 accumulation).
    bf16 = jnp.bfloat16
    xn = jnp.clip((obs - p["obs_mean"]) * jax.lax.rsqrt(p["obs_var"] + _OBS_EPS),
                  -_OBS_CLIP, _OBS_CLIP)
    pre1 = jnp.dot(xn.astype(bf16), p["w1"].astype(bf16),
                   preferred_element_type=jnp.float32) + p["b1"]
    h1 = jnp.tanh(pre1.astype(bf16)) if use_bf16_act else jnp.tanh(pre1).astype(bf16)
    pre2 = jnp.dot(h1, p["w2"].astype(bf16),
                   preferred_element_type=jnp.float32) + p["b2"]
    h2 = jnp.tanh(pre2.astype(bf16)) if use_bf16_act else jnp.tanh(pre2).astype(bf16)
    mean = jnp.dot(h2, p["w3"].astype(bf16),
                   preferred_element_type=jnp.float32) + p["b3"]
    z = (action - mean) * jnp.exp(-p["log_std"])
    k = action.shape[-1]
    logp = (-0.5 * jnp.sum(z * z, axis=-1, keepdims=True)
            - jnp.sum(p["log_std"], axis=-1, keepdims=True) - 0.5 * k * _LOG_2PI)
    return mean, logp


def init_params(key, obs_dim, hidden, act_dim):
    ks = jax.random.split(key, 8)
    s1 = 1.0 / np.sqrt(obs_dim)
    s2 = 1.0 / np.sqrt(hidden)
    return {
        "obs_mean": 0.1 * jax.random.normal(ks[0], (1, obs_dim), jnp.float32),
        "obs_var": jnp.ones((1, obs_dim), jnp.float32)
                   + 0.05 * jax.random.uniform(ks[1], (1, obs_dim)),
        "w1": s1 * jax.random.normal(ks[2], (obs_dim, hidden), jnp.float32),
        "b1": jnp.zeros((1, hidden), jnp.float32),
        "w2": s2 * jax.random.normal(ks[3], (hidden, hidden), jnp.float32),
        "b2": jnp.zeros((1, hidden), jnp.float32),
        "w3": s2 * jax.random.normal(ks[4], (hidden, act_dim), jnp.float32),
        "b3": jnp.zeros((1, act_dim), jnp.float32),
        "log_std": -0.5 * jnp.ones((1, act_dim), jnp.float32),
    }


if __name__ == "__main__":
    B, OBS, HID, ACT = 8, 32, 64, 8
    key = jax.random.PRNGKey(0)
    k_obs, k_act, k_par = jax.random.split(key, 3)

    obs = jax.random.normal(k_obs, (B, OBS), jnp.float32)
    action = jax.random.normal(k_act, (B, ACT), jnp.float32)
    params = init_params(k_par, OBS, HID, ACT)

    prepared = prepare_params(params)          # one-time param packing / bf16 cast
    mean, logp = policy_get_action(obs, action, prepared)
    jax.block_until_ready((mean, logp))

    mean_ref, logp_ref = _reference(obs, action, params, _USE_BF16_ACT)
    assert mean.shape == (B, ACT) and logp.shape == (B, 1)
    # Tolerances sized for bf16 activations (matmul inputs + tanh on v6e/v7x).
    assert np.allclose(np.asarray(mean), np.asarray(mean_ref), atol=2e-2, rtol=2e-2)
    assert np.allclose(np.asarray(logp), np.asarray(logp_ref), atol=5e-2, rtol=2e-2)

    # TODO(synk): action *sampling* (MultivariateNormal.rsample) is left in JAX
    # land; only mean + log_prob are computed in-kernel.
    print("KERNEL_OK")
</pallas_src>

<mosaic_0001>
module attributes {stable_mosaic.version = 11 : i64} {
  func.func @_policy_kernel(%arg0: i32, %arg1: memref<8x32xf32, #tpu.memory_space<vmem>>, %arg2: memref<8x8xf32, #tpu.memory_space<vmem>>, %arg3: memref<8x64xf32, #tpu.memory_space<vmem>>, %arg4: memref<32x64xbf16, #tpu.memory_space<vmem>>, %arg5: memref<64x64xbf16, #tpu.memory_space<vmem>>, %arg6: memref<64x8xbf16, #tpu.memory_space<vmem>>, %arg7: memref<1x16x8xf32, #tpu.memory_space<vmem>>) attributes {dimension_semantics = [#tpu.dimension_semantics<parallel>], iteration_bounds = array<i64: 1>, scalar_prefetch = 0 : i64, scratch_operands = 0 : i64, tpu.core_type = #tpu.core_type<tc>, window_params = [{transform_indices = @transform_0, window_bounds = array<i64: 8, 32>}, {transform_indices = @transform_1, window_bounds = array<i64: 8, 8>}, {pipeline_mode = #tpu.pipeline_mode<synchronous>, transform_indices = @transform_2, window_bounds = array<i64: 8, 64>}, {pipeline_mode = #tpu.pipeline_mode<synchronous>, transform_indices = @transform_3, window_bounds = array<i64: 32, 64>}, {pipeline_mode = #tpu.pipeline_mode<synchronous>, transform_indices = @transform_4, window_bounds = array<i64: 64, 64>}, {pipeline_mode = #tpu.pipeline_mode<synchronous>, transform_indices = @transform_5, window_bounds = array<i64: 64, 8>}, {transform_indices = @transform_6, window_bounds = array<i64: 1, 16, 8>}]} {
    %c0 = arith.constant 0 : index
    %c0_0 = arith.constant 0 : index
    %0 = vector.load %arg3[%c0, %c0_0] : memref<8x64xf32, #tpu.memory_space<vmem>>, vector<1x32xf32>
    %c1 = arith.constant 1 : index
    %c0_1 = arith.constant 0 : index
    %1 = vector.load %arg3[%c1, %c0_1] : memref<8x64xf32, #tpu.memory_space<vmem>>, vector<1x32xf32>
    %c2 = arith.constant 2 : index
    %c0_2 = arith.constant 0 : index
    %2 = vector.load %arg3[%c2, %c0_2] : memref<8x64xf32, #tpu.memory_space<vmem>>, vector<1x64xf32>
    %c3 = arith.constant 3 : index
    %c0_3 = arith.constant 0 : index
    %3 = vector.load %arg3[%c3, %c0_3] : memref<8x64xf32, #tpu.memory_space<vmem>>, vector<1x64xf32>
    %c4 = arith.constant 4 : index
    %c0_4 = arith.constant 0 : index
    %4 = vector.load %arg3[%c4, %c0_4] : memref<8x64xf32, #tpu.memory_space<vmem>>, vector<1x8xf32>
    %c5 = arith.constant 5 : index
    %c0_5 = arith.constant 0 : index
    %5 = vector.load %arg3[%c5, %c0_5] : memref<8x64xf32, #tpu.memory_space<vmem>>, vector<1x8xf32>
    %c0_6 = arith.constant 0 : index
    %c0_7 = arith.constant 0 : index
    %6 = vector.load %arg1[%c0_6, %c0_7] : memref<8x32xf32, #tpu.memory_space<vmem>>, vector<8x32xf32>
    %7 = vector.broadcast %0 : vector<1x32xf32> to vector<8x32xf32>
    %8 = arith.subf %6, %7 : vector<8x32xf32>
    %cst = arith.constant 9.99999993E-9 : f32
    %9 = vector.broadcast %cst : f32 to vector<1x32xf32>
    %10 = arith.addf %1, %9 : vector<1x32xf32>
    %11 = math.rsqrt %10 : vector<1x32xf32>
    %12 = vector.broadcast %11 : vector<1x32xf32> to vector<8x32xf32>
    %13 = arith.mulf %8, %12 : vector<8x32xf32>
    %cst_8 = arith.constant -1.000000e+01 : f32
    %cst_9 = arith.constant 1.000000e+01 : f32
    %14 = vector.broadcast %cst_8 : f32 to vector<8x32xf32>
    %15 = arith.maximumf %14, %13 : vector<8x32xf32>
    %16 = vector.broadcast %cst_9 : f32 to vector<8x32xf32>
    %17 = arith.minimumf %16, %15 : vector<8x32xf32>
    %18 = arith.truncf %17 : vector<8x32xf32> to vector<8x32xbf16>
    %c0_10 = arith.constant 0 : index
    %c0_11 = arith.constant 0 : index
    %19 = vector.load %arg4[%c0_10, %c0_11] : memref<32x64xbf16, #tpu.memory_space<vmem>>, vector<32x64xbf16>
    %cst_12 = arith.constant dense<0.000000e+00> : vector<8x64xf32>
    %20 = tpu.matmul %18, %19, %cst_12 {dimension_numbers = #tpu.dot_dimension_numbers<[1], [0], [0], [1], [0, 0, 1, 1], [], []>} : vector<8x32xbf16>, vector<32x64xbf16>, vector<8x64xf32> -> vector<8x64xf32>
    %21 = vector.broadcast %2 : vector<1x64xf32> to vector<8x64xf32>
    %22 = arith.addf %20, %21 : vector<8x64xf32>
    %23 = math.tanh %22 : vector<8x64xf32>
    %24 = arith.truncf %23 : vector<8x64xf32> to vector<8x64xbf16>
    %c0_13 = arith.constant 0 : index
    %c0_14 = arith.constant 0 : index
    %25 = vector.load %arg5[%c0_13, %c0_14] : memref<64x64xbf16, #tpu.memory_space<vmem>>, vector<64x64xbf16>
    %cst_15 = arith.constant dense<0.000000e+00> : vector<8x64xf32>
    %26 = tpu.matmul %24, %25, %cst_15 {dimension_numbers = #tpu.dot_dimension_numbers<[1], [0], [0], [1], [0, 0, 1, 1], [], []>} : vector<8x64xbf16>, vector<64x64xbf16>, vector<8x64xf32> -> vector<8x64xf32>
    %27 = vector.broadcast %3 : vector<1x64xf32> to vector<8x64xf32>
    %28 = arith.addf %26, %27 : vector<8x64xf32>
    %29 = math.tanh %28 : vector<8x64xf32>
    %30 = arith.truncf %29 : vector<8x64xf32> to vector<8x64xbf16>
    %c0_16 = arith.constant 0 : index
    %c0_17 = arith.constant 0 : index
    %31 = vector.load %arg6[%c0_16, %c0_17] : memref<64x8xbf16, #tpu.memory_space<vmem>>, vector<64x8xbf16>
    %cst_18 = arith.constant dense<0.000000e+00> : vector<8x8xf32>
    %32 = tpu.matmul %30, %31, %cst_18 {dimension_numbers = #tpu.dot_dimension_numbers<[1], [0], [0], [1], [0, 0, 1, 1], [], []>} : vector<8x64xbf16>, vector<64x8xbf16>, vector<8x8xf32> -> vector<8x8xf32>
    %33 = vector.broadcast %4 : vector<1x8xf32> to vector<8x8xf32>
    %34 = arith.addf %32, %33 : vector<8x8xf32>
    %cst_19 = arith.constant 0.000000e+00 : f32
    %35 = vector.broadcast %cst_19 : f32 to vector<1x8xf32>
    %36 = arith.subf %35, %5 : vector<1x8xf32>
    %37 = math.exp %36 : vector<1x8xf32>
    %c0_20 = arith.constant 0 : index
    %c0_21 = arith.constant 0 : index
    %38 = vector.load %arg2[%c0_20, %c0_21] : memref<8x8xf32, #tpu.memory_space<vmem>>, vector<8x8xf32>
    %39 = arith.subf %38, %34 : vector<8x8xf32>
    %40 = vector.broadcast %37 : vector<1x8xf32> to vector<8x8xf32>
    %41 = arith.mulf %39, %40 : vector<8x8xf32>
    %cst_22 = arith.constant 1.000000e+00 : f32
    %42 = vector.broadcast %cst_22 : f32 to vector<1x8xf32>
    %43 = arith.mulf %41, %41 : vector<8x8xf32>
    %cst_23 = arith.constant dense<0.000000e+00> : vector<1x8xf32>
    %44 = tpu.matmul %42, %43, %cst_23 {dimension_numbers = #tpu.dot_dimension_numbers<[1], [1], [0], [0], [0, 0, 1, 0], [], []>} : vector<1x8xf32>, vector<8x8xf32>, vector<1x8xf32> -> vector<1x8xf32>
    %cst_24 = arith.constant dense<0.000000e+00> : vector<1xf32>
    %45 = vector.multi_reduction <add>, %5, %cst_24 [1] : vector<1x8xf32> to vector<1xf32>
    %46 = vector.shape_cast %45 : vector<1xf32> to vector<1x1xf32>
    %cst_25 = arith.constant -5.000000e-01 : f32
    %47 = vector.broadcast %cst_25 : f32 to vector<1x8xf32>
    %48 = arith.mulf %47, %44 : vector<1x8xf32>
    %49 = vector.broadcast %46 : vector<1x1xf32> to vector<1x8xf32>
    %50 = arith.subf %48, %49 : vector<1x8xf32>
    %cst_26 = arith.constant 7.35150814 : f32
    %51 = vector.broadcast %cst_26 : f32 to vector<1x8xf32>
    %52 = arith.subf %50, %51 : vector<1x8xf32>
    %53 = tpu.transpose %34, [1, 0] : vector<8x8xf32> -> vector<8x8xf32>
    %c0_27 = arith.constant 0 : index
    %c0_28 = arith.constant 0 : index
    %c0_29 = arith.constant 0 : index
    %54 = vector.load %arg7[%c0_27, %c0_28, %c0_29] : memref<1x16x8xf32, #tpu.memory_space<vmem>>, vector<1x8x8xf32>
    %55 = vector.shape_cast %54 : vector<1x8x8xf32> to vector<8x8xf32>
    %56 = vector.shape_cast %53 : vector<8x8xf32> to vector<1x8x8xf32>
    tpu.vector_store %arg7[%c0_27, %c0_28, %c0_29], %56 {strides = array<i32>} : memref<1x16x8xf32, #tpu.memory_space<vmem>>, vector<1x8x8xf32>,
    %cst_30 = arith.constant 0.000000e+00 : f32
    %57 = vector.broadcast %cst_30 : f32 to vector<7x8xf32>
    %58 = tpu.concatenate %52, %57 in 0 : vector<1x8xf32>, vector<7x8xf32> -> vector<8x8xf32>
    %c0_31 = arith.constant 0 : index
    %c8 = arith.constant 8 : index
    %c0_32 = arith.constant 0 : index
    %59 = vector.load %arg7[%c0_31, %c8, %c0_32] : memref<1x16x8xf32, #tpu.memory_space<vmem>>, vector<1x8x8xf32>
    %60 = vector.shape_cast %59 : vector<1x8x8xf32> to vector<8x8xf32>
    %61 = vector.shape_cast %58 : vector<8x8xf32> to vector<1x8x8xf32>
    tpu.vector_store %arg7[%c0_31, %c8, %c0_32], %61 {strides = array<i32>} : memref<1x16x8xf32, #tpu.memory_space<vmem>>, vector<1x8x8xf32>,
    return
  }
  func.func @transform_0(%arg0: i32) -> (i32, i32) {
    %c0_i32 = arith.constant 0 : i32
    %c0_i32_0 = arith.constant 0 : i32
    return %arg0, %c0_i32 : i32, i32
  }
  func.func @transform_1(%arg0: i32) -> (i32, i32) {
    %c0_i32 = arith.constant 0 : i32
    %c0_i32_0 = arith.constant 0 : i32
    return %arg0, %c0_i32 : i32, i32
  }
  func.func @transform_2(%arg0: i32) -> (i32, i32) {
    %c0_i32 = arith.constant 0 : i32
    %c0_i32_0 = arith.constant 0 : i32
    %c0_i32_1 = arith.constant 0 : i32
    return %c0_i32, %c0_i32_0 : i32, i32
  }
  func.func @transform_3(%arg0: i32) -> (i32, i32) {
    %c0_i32 = arith.constant 0 : i32
    %c0_i32_0 = arith.constant 0 : i32
    %c0_i32_1 = arith.constant 0 : i32
    return %c0_i32, %c0_i32_0 : i32, i32
  }
  func.func @transform_4(%arg0: i32) -> (i32, i32) {
    %c0_i32 = arith.constant 0 : i32
    %c0_i32_0 = arith.constant 0 : i32
    %c0_i32_1 = arith.constant 0 : i32
    return %c0_i32, %c0_i32_0 : i32, i32
  }
  func.func @transform_5(%arg0: i32) -> (i32, i32) {
    %c0_i32 = arith.constant 0 : i32
    %c0_i32_0 = arith.constant 0 : i32
    %c0_i32_1 = arith.constant 0 : i32
    return %c0_i32, %c0_i32_0 : i32, i32
  }
  func.func @transform_6(%arg0: i32) -> (i32, i32, i32) {
    %c0_i32 = arith.constant 0 : i32
    %c0_i32_0 = arith.constant 0 : i32
    %c0_i32_1 = arith.constant 0 : i32
    return %arg0, %c0_i32, %c0_i32_0 : i32, i32, i32
  }
}

</mosaic_0001>

<llo_original>
// kernel: policy_get_action.1
$region0: #{policy_get_action.1}
  #allocation0 [shape = 'u32[]', space=smem, size = 0x4, offset = 0x4, fixed_abs, tag = 'smem constant byte address 0x4 - core index']
  #allocation1 [shape = 'u32[72,128]{1,0:T(1,128)}', space=vmem, size = 0x9000, scoped, tag = 'internal scratch']
  %s0 = inlined_call_operand.hbm [shape: f32[8,32], index: 0, kind: input, shape index: {}]
  %s1 = inlined_call_operand.hbm [shape: f32[8,8], index: 1, kind: input, shape index: {}]
  %s2 = inlined_call_operand.hbm [shape: f32[8,64], index: 2, kind: input, shape index: {}]
  %s3 = inlined_call_operand.hbm [shape: bf16[32,64], index: 3, kind: input, shape index: {}]
  %s4 = inlined_call_operand.vmem [shape: bf16[64,64], index: 4, kind: input, shape index: {}]
  %s5 = inlined_call_operand.vmem [shape: bf16[64,8], index: 5, kind: input, shape index: {}]
  %s6 = inlined_call_operand.vmem [shape: f32[1,16,8], index: 6, kind: output, shape index: {}]
  %s7 = sld [smem:[#allocation0]]
  $region50: #{policy_get_action.1} parent=0
    _
  %s9 = ssub.s32 1, %s7
  %s10 = scalar_select 0, %s9, %s7
  $region1: #{policy_get_action.1} parent=0
    #allocation2 [shape = 'u8[4096]{0}', space=vmem, size = 0x1000, scoped, tag = 'input window, operand 0, single buffered']
    #allocation3 [shape = 's32[1]{0}', space=sflag, size = 0x4, scoped, tag = 'scoped memory for policy_get_action.1']
    #allocation4 [shape = 'u8[4096]{0}', space=vmem, size = 0x1000, scoped, tag = 'input window, operand 1, single buffered']
    #allocation5 [shape = 's32[1]{0}', space=sflag, size = 0x4, scoped, tag = 'scoped memory for policy_get_action.1']
    #allocation6 [shape = 'u8[4096]{0}', space=vmem, size = 0x1000, scoped, tag = 'input window, operand 2, single buffered']
    #allocation7 [shape = 'u8[8192]{0}', space=vmem, size = 0x2000, scoped, tag = 'input window, operand 3, single buffered']
    #allocation8 [shape = 's32[1]{0}', space=sflag, size = 0x4, scoped, tag = 'scoped memory for policy_get_action.1']
    %11 = vsyncpa [#allocation3], 0
    %12 = vsyncpa [#allocation5], 0
    %13 = vsyncpa [#allocation8], 0
    // Predicated region
    $region2: #{policy_get_action.1} parent=1 // pred_check
      _
    $region3: #{policy_get_action.1} parent=1 // pred_check_branch
      %15 = sbr.rel (0) target = $region5
    $region4: #{policy_get_action.1} parent=1 // pred_region
      %17 = vsyncadd [#allocation3], 0
      %s19 = sshll.u32 %s0, 4
      %s20 = int_to_ptr.hbm [resolvable:$true] %s19
      %s21 = sshll.u32 [#allocation2], 4
      %s22 = int_to_ptr.vmem [resolvable:$true] %s21
      %24 = dma.hbm_to_vmem [thread:$0]  %s20, 128, %s22, [#allocation3]
    $region5: #{policy_get_action.1} parent=1 // pred_fallthru
      _
    // Predicated region
    $region6: #{policy_get_action.1} parent=1 // pred_check
      _
    $region7: #{policy_get_action.1} parent=1 // pred_check_branch
      %26 = sbr.rel (0) target = $region9
    $region8: #{policy_get_action.1} parent=1 // pred_region
      %28 = vsyncadd [#allocation5], 0
      %s30 = sshll.u32 %s1, 4
      %s31 = int_to_ptr.hbm [resolvable:$true] %s30
      %s32 = sshll.u32 [#allocation4], 4
      %s33 = int_to_ptr.vmem [resolvable:$true] %s32
      %35 = dma.hbm_to_vmem [thread:$0]  %s31, 128, %s33, [#allocation5]
    $region9: #{policy_get_action.1} parent=1 // pred_fallthru
      _
    // Predicated region
    $region10: #{policy_get_action.1} parent=1 // pred_check
      _
    $region11: #{policy_get_action.1} parent=1 // pred_check_branch
      %37 = sbr.rel (0) target = $region13
    $region12: #{policy_get_action.1} parent=1 // pred_region
      %39 = vsyncadd [#allocation5], 0
      %s41 = sshll.u32 %s2, 4
      %s42 = int_to_ptr.hbm [resolvable:$true] %s41
      %s43 = sshll.u32 [#allocation6], 4
      %s44 = int_to_ptr.vmem [resolvable:$true] %s43
      %46 = dma.hbm_to_vmem [thread:$0]  %s42, 128, %s44, [#allocation5]
    $region13: #{policy_get_action.1} parent=1 // pred_fallthru
      _
    // Predicated region
    $region14: #{policy_get_action.1} parent=1 // pred_check
      _
    $region15: #{policy_get_action.1} parent=1 // pred_check_branch
      %48 = sbr.rel (0) target = $region17
    $region16: #{policy_get_action.1} parent=1 // pred_region
      %50 = vsyncadd [#allocation8], 0
      %s51 = sshll.u32 %s3, 4
      %s52 = int_to_ptr.hbm [resolvable:$true] %s51
      %s53 = sshll.u32 [#allocation7], 4
      %s54 = int_to_ptr.vmem [resolvable:$true] %s53
      %59 = dma.hbm_to_vmem [thread:$0]  %s52, 256, %s54, [#allocation8], 64, 64, 4
    $region17: #{policy_get_action.1} parent=1 // pred_fallthru
      _
    // Predicated region
    $region18: #{policy_get_action.1} parent=1 // pred_check
      _
    $region19: #{policy_get_action.1} parent=1 // pred_check_branch
      %61 = sbr.rel (0) target = $region21
    $region20: #{policy_get_action.1} parent=1 // pred_region
      _
    $region21: #{policy_get_action.1} parent=1 // pred_fallthru
      _
    // Predicated region
    $region22: #{policy_get_action.1} parent=1 // pred_check
      _
    $region23: #{policy_get_action.1} parent=1 // pred_check_branch
      %63 = sbr.rel (0) target = $region25
    $region24: #{policy_get_action.1} parent=1 // pred_region
      _
    $region25: #{policy_get_action.1} parent=1 // pred_fallthru
      _
    // Predicated region
    $region26: #{policy_get_action.1} parent=1 // pred_check
      _
    $region27: #{policy_get_action.1} parent=1 // pred_check_branch
      %65 = sbr.rel (0) target = $region29
    $region28: #{policy_get_action.1} parent=1 // pred_region
      %67 = dma.done [#allocation3], 128
    $region29: #{policy_get_action.1} parent=1 // pred_fallthru
      _
    // Predicated region
    $region30: #{policy_get_action.1} parent=1 // pred_check
      _
    $region31: #{policy_get_action.1} parent=1 // pred_check_branch
      %69 = sbr.rel (0) target = $region33
    $region32: #{policy_get_action.1} parent=1 // pred_region
      %71 = dma.done [#allocation5], 128
    $region33: #{policy_get_action.1} parent=1 // pred_fallthru
      _
    // Predicated region
    $region34: #{policy_get_action.1} parent=1 // pred_check
      _
    $region35: #{policy_get_action.1} parent=1 // pred_check_branch
      %73 = sbr.rel (0) target = $region37
    $region36: #{policy_get_action.1} parent=1 // pred_region
      %75 = dma.done [#allocation5], 128
    $region37: #{policy_get_action.1} parent=1 // pred_fallthru
      _
    // Predicated region
    $region38: #{policy_get_action.1} parent=1 // pred_check
      _
    $region39: #{policy_get_action.1} parent=1 // pred_check_branch
      %77 = sbr.rel (0) target = $region41
    $region40: #{policy_get_action.1} parent=1 // pred_region
      %79 = dma.done [#allocation8], 256
    $region41: #{policy_get_action.1} parent=1 // pred_fallthru
      _
    %v81 = vld [vmem:[#allocation6] sm:$0x1]
    %v82 = vld [vmem:[#allocation6 + $0x1] sm:$0x1]
    %v83 = vld [vmem:[#allocation6 + $0x2] sm:$0x1]
    %v84 = vld [vmem:[#allocation6 + $0x3] sm:$0x1]
    %v85 = vld [vmem:[#allocation6 + $0x4] sm:$0x1]
    %v86 = vld [vmem:[#allocation6 + $0x5] sm:$0x1]
    %v87 = vld [vmem:[#allocation2] sm:$0xff]
    %v88 = vperm.slane %v81, 0
    %v89 = vsub.f32 %v87, %v88
    %v90 = vadd.f32 %v82, 1e-08
    %v91 = vrsqrt.pop %v90
    %v92 = vmul.f32 %v91, %v90
    %v93 = vmul.f32 %v92, %v91
    %v94 = vmul.f32 0.5, %v93
    %v95 = vsub.f32 1.5, %v94
    %v96 = vmul.f32 %v91, %v95
    %vm97 = vweird.f32 %v90
    %vm98 = vweird.f32 %v91
    %vm99 = vmor %vm97, %vm98
    %v100 = vsel %vm99, %v91, %v96
    %v101 = vperm.slane %v100, 0
    %v102 = vmul.f32 %v89, %v101
    %v103 = vmax.f32 %v102, -10.0
    %v104 = vmin.f32 %v103, 10.0
    %v105 = vpack.c.bf16 %v104, %v104
    %v106 = vld [vmem:[#allocation7] sm:$0xf]
    %v107 = vld [vmem:[#allocation7 + $0x4] sm:$0xf]
    %v108 = vld [vmem:[#allocation7 + $0x8] sm:$0xf]
    %v109 = vld [vmem:[#allocation7 + $0xc] sm:$0xf]
    %v110 = vperm.slane %v83, 0
    %v115 = vunpack.c.l.b16 %v106
    %v116 = vunpack.c.l.b16 %v107
    %v117 = vunpack.c.l.b16 %v108
    %v118 = vunpack.c.l.b16 %v109
    %v119 = vpack.c.b16 %v116, %v115
    %v120 = vpack.c.b16 %v118, %v117
    %vm123 = vcmask 261120
    %v125 = vsel %vm123, %v105, 0
    %127 = vmatpush.bf16.msra.mxu0 0
    %128 = vmatpush.bf16.msra.mxu0 0
    %129 = vmatpush.bf16.msra.mxu0 0
    %130 = vmatpush.bf16.msra.mxu0 0
    %131 = vmatpush.bf16.msra.mxu0 0
    %132 = vmatpush.bf16.msra.mxu0 0
    %133 = vmatpush.bf16.msra.mxu0 %v120
    %134 = vmatpush.bf16.msra.mxu0 %v119
    %135 = vmatmul.bf16.gmra.mxu0 %v125
    %v136 = vpop.f32.mrf.mxu0
    %v137 = vadd.f32 %v110, %v136
    %v138 = vpop.f32.mrf.mxu0
    %139 = vdwg.mxu0
    %v140 = vtanh.pop %v137
    %v141 = vpack.c.bf16 %v140, %v140
    %v142 = vld [vmem:[%s4] sm:$0xf]
    %v143 = vld [vmem:[%s4 + $0x4] sm:$0xf]
    %v144 = vld [vmem:[%s4 + $0x8] sm:$0xf]
    %v145 = vld [vmem:[%s4 + $0xc] sm:$0xf]
    %v146 = vld [vmem:[%s4 + $0x10] sm:$0xf]
    %v147 = vld [vmem:[%s4 + $0x14] sm:$0xf]
    %v148 = vld [vmem:[%s4 + $0x18] sm:$0xf]
    %v149 = vld [vmem:[%s4 + $0x1c] sm:$0xf]
    %v150 = vperm.slane %v84, 0
    %v159 = vunpack.c.l.b16 %v142
    %v160 = vunpack.c.l.b16 %v143
    %v161 = vunpack.c.l.b16 %v144
    %v162 = vunpack.c.l.b16 %v145
    %v163 = vunpack.c.l.b16 %v146
    %v164 = vunpack.c.l.b16 %v147
    %v165 = vunpack.c.l.b16 %v148
    %v166 = vunpack.c.l.b16 %v149
    %v167 = vpack.c.b16 %v160, %v159
    %v168 = vpack.c.b16 %v162, %v161
    %v169 = vpack.c.b16 %v164, %v163
    %v170 = vpack.c.b16 %v166, %v165
    %vm175 = vcmask 523264
    %v177 = vsel %vm175, %v141, 0
    %179 = vmatpush.bf16.msra.mxu0 0
    %180 = vmatpush.bf16.msra.mxu0 0
    %181 = vmatpush.bf16.msra.mxu0 0
    %182 = vmatpush.bf16.msra.mxu0 0
    %183 = vmatpush.bf16.msra.mxu0 %v170
    %184 = vmatpush.bf16.msra.mxu0 %v169
    %185 = vmatpush.bf16.msra.mxu0 %v168
    %186 = vmatpush.bf16.msra.mxu0 %v167
    %187 = vmatmul.bf16.gmra.mxu0 %v177
    %v188 = vpop.f32.mrf.mxu0
    %v189 = vadd.f32 %v150, %v188
    %v190 = vpop.f32.mrf.mxu0
    %191 = vdwg.mxu0
    %v192 = vtanh.pop %v189
    %v193 = vpack.c.bf16 %v192, %v192
    %v194 = vld [vmem:[%s5] sm:$0xf]
    %v195 = vld [vmem:[%s5 + $0x4] sm:$0xf]
    %v196 = vld [vmem:[%s5 + $0x8] sm:$0xf]
    %v197 = vld [vmem:[%s5 + $0xc] sm:$0xf]
    %v198 = vld [vmem:[%s5 + $0x10] sm:$0xf]
    %v199 = vld [vmem:[%s5 + $0x14] sm:$0xf]
    %v200 = vld [vmem:[%s5 + $0x18] sm:$0xf]
    %v201 = vld [vmem:[%s5 + $0x1c] sm:$0xf]
    %v202 = vperm.slane %v85, 0
    %v211 = vunpack.c.l.b16 %v194
    %v212 = vunpack.c.l.b16 %v195
    %v213 = vunpack.c.l.b16 %v196
    %v214 = vunpack.c.l.b16 %v197
    %v215 = vunpack.c.l.b16 %v198
    %v216 = vunpack.c.l.b16 %v199
    %v217 = vunpack.c.l.b16 %v200
    %v218 = vunpack.c.l.b16 %v201
    %v219 = vpack.c.b16 %v212, %v211
    %v220 = vpack.c.b16 %v214, %v213
    %v221 = vpack.c.b16 %v216, %v215
    %v222 = vpack.c.b16 %v218, %v217
    %v228 = vsel %vm175, %v193, 0
    %230 = vmatpush.bf16.msra.mxu0 0
    %231 = vmatpush.bf16.msra.mxu0 0
    %232 = vmatpush.bf16.msra.mxu0 0
    %233 = vmatpush.bf16.msra.mxu0 0
    %234 = vmatpush.bf16.msra.mxu0 %v222
    %235 = vmatpush.bf16.msra.mxu0 %v221
    %236 = vmatpush.bf16.msra.mxu0 %v220
    %237 = vmatpush.bf16.msra.mxu0 %v219
    %238 = vmatmul.bf16.gmra.mxu0 %v228
    %v239 = vpop.f32.mrf.mxu0
    %v240 = vadd.f32 %v202, %v239
    %v241 = vpop.f32.mrf.mxu0
    %242 = vdwg.mxu0
    %v243 = vsub.f32 0.0, %v86
    %v244 = vmul.f32 %v243, 1.442695
    %v245 = vpow.pop %v244
    %v246 = vld [vmem:[#allocation4] sm:$0xff]
    %v247 = vsub.f32 %v246, %v240
    %v248 = vperm.slane %v245, 0
    %v249 = vmul.f32 %v247, %v248
    %v250 = vmul.f32 %v249, %v249
    %vm251 = vcmask 64512
    %v253 = vsel %vm251, 1.0, 0
    %v256 = vsel %vm251, %v250, 0
    %258 = vmatpush.xpose.msra.mxu0 0.0
    %259 = vmatpush.xpose.msra.mxu0 0.0
    %260 = vmatpush.xpose.msra.mxu0 0.0
    %261 = vmatpush.xpose.msra.mxu0 0.0
    %262 = vmatpush.xpose.msra.mxu0 0.0
    %263 = vmatpush.xpose.msra.mxu0 0.0
    %264 = vmatpush.xpose.msra.mxu0 0.0
    %265 = vmatpush.xpose.msra.mxu0 0.0
    %266 = vmatpush.xpose.msra.mxu0 0.0
    %267 = vmatpush.xpose.msra.mxu0 0.0
    %268 = vmatpush.xpose.msra.mxu0 0.0
    %269 = vmatpush.xpose.msra.mxu0 0.0
    %270 = vmatpush.xpose.msra.mxu0 0.0
    %271 = vmatpush.xpose.msra.mxu0 0.0
    %272 = vmatpush.xpose.msra.mxu0 0.0
    %273 = vmatpush.xpose.msra.mxu0 %v256
    %274 = vmatmul.f32.gmra.mxu0 %v253
    %v275 = vpop.f32.mrf.mxu0
    %v276 = vadd.f32 0.0, %v275
    %277 = vdwg.mxu0
    %vm278 = vcmask 57344
    %v279 = vsel %vm278, %v86, 0.0
    %280 = vadd.xlane.f32.xlu0 %v279
    %v281 = vpop.xlane.xlu0 %280
    %v282 = vmul.f32 %v276, -0.5
    %v283 = vsub.f32 %v282, %v281
    %v284 = vsub.f32 %v283, 7.351508
    %285 = vxpose.xlu0.b32.start [1/16] %v240, 128
    %286 = vxpose.xlu0.b32.cont [2/16] 0.0, 128
    %287 = vxpose.xlu0.b32.cont [3/16] 0.0, 128
    %288 = vxpose.xlu0.b32.cont [4/16] 0.0, 128
    %289 = vxpose.xlu0.b32.cont [5/16] 0.0, 128
    %290 = vxpose.xlu0.b32.cont [6/16] 0.0, 128
    %291 = vxpose.xlu0.b32.cont [7/16] 0.0, 128
    %292 = vxpose.xlu0.b32.cont [8/16] 0.0, 128
    %293 = vxpose.xlu0.b32.cont [9/16] 0.0, 128
    %294 = vxpose.xlu0.b32.cont [10/16] 0.0, 128
    %295 = vxpose.xlu0.b32.cont [11/16] 0.0, 128
    %296 = vxpose.xlu0.b32.cont [12/16] 0.0, 128
    %297 = vxpose.xlu0.b32.cont [13/16] 0.0, 128
    %298 = vxpose.xlu0.b32.cont [14/16] 0.0, 128
    %299 = vxpose.xlu0.b32.cont [15/16] 0.0, 128
    %300 = vxpose.xlu0.b32.end [16/16] 0.0, 128
    %v301 = vpop.trf.xlu0
    %v302 = vpop.trf.xlu0
    %v303 = vpop.trf.xlu0
    %v304 = vpop.trf.xlu0
    %v305 = vpop.trf.xlu0
    %v306 = vpop.trf.xlu0
    %v307 = vpop.trf.xlu0
    %v308 = vpop.trf.xlu0
    %v309 = vpop.trf.xlu0
    %v310 = vpop.trf.xlu0
    %v311 = vpop.trf.xlu0
    %v312 = vpop.trf.xlu0
    %v313 = vpop.trf.xlu0
    %v314 = vpop.trf.xlu0
    %v315 = vpop.trf.xlu0
    %v316 = vpop.trf.xlu0
    %317 = vst.msk [vmem:[%s6] sm:$0xff] %vm251, %v301
    %vm318 = vcmask 1040384
    %v319 = vsel %vm318, %v284, 0.0
    %320 = vst.msk [vmem:[%s6 + $0x8] sm:$0xff] %vm251, %v319
    // Predicated region
    $region42: #{policy_get_action.1} parent=1 // pred_check
      _
    $region43: #{policy_get_action.1} parent=1 // pred_check_branch
      %322 = sbr.rel (0) target = $region45
    $region44: #{policy_get_action.1} parent=1 // pred_region
      _
    $region45: #{policy_get_action.1} parent=1 // pred_fallthru
      _
    // Predicated region
    $region46: #{policy_get_action.1} parent=1 // pred_check
      _
    $region47: #{policy_get_action.1} parent=1 // pred_check_branch
      %324 = sbr.rel (0) target = $region49
    $region48: #{policy_get_action.1} parent=1 // pred_region
      _
    $region49: #{policy_get_action.1} parent=1 // pred_fallthru
      _
    %325 = vsyncpa [#allocation3], 1
    %326 = vsyncpa [#allocation5], 1
    %327 = vsyncpa [#allocation8], 1

</llo_original>
